<compile_context>
chip_gen: v7x
topology: tpu7x:2x2x1
jax: 0.10.0
libtpu: 0.0.40
codegen_flags: <defaults>
</compile_context>

<pallas_src>
import functools

import jax
import jax.numpy as jnp
from jax.experimental import pallas as pl
from jax.experimental.pallas import tpu as pltpu


def _round_up(x, m):
    return ((x + m - 1) // m) * m


# ----------------------------- fused kernel ---------------------------------
def _td_lstm_fused_kernel(maxlen_ref,   # SMEM (1,)        int32 (scalar prefetch)
                          x_ref,        # VMEM (T*Bp, 2E)  bf16  time-major
                          lens_ref,     # VMEM (Bp, 2)     int32 [len_l, len_r]
                          wih_ref,      # VMEM (2E, 8Hp)   bf16  block-diag, interleaved
                          whh_ref,      # VMEM (2Hp, 8Hp)  f32   block-diag, interleaved
                          bias_ref,     # VMEM (1, 8Hp)    f32   b_ih + b_hh
                          dw_ref,       # VMEM (2Hp, Pp)   f32   dense W^T (padded)
                          db_ref,       # VMEM (1, Pp)     f32
                          out_ref,      # VMEM (Bp, Pp)    f32
                          gates_sc):    # VMEM (T*Bp, 8Hp) f32 scratch
    Bp = out_ref.shape[0]
    G8 = gates_sc.shape[1]
    H2 = G8 // 4            # 2 * Hp (both directions concatenated)
    Hp = H2 // 2

    # (1) Hoisted input projection: one bf16 MXU matmul over ALL timesteps and
    #     BOTH directions (f32 accumulate), off the serial recurrence path.
    gates_sc[...] = (jnp.dot(x_ref[...], wih_ref[...],
                             preferred_element_type=jnp.float32)
                     + bias_ref[...])

    # lane -> per-direction length map, computed ONCE outside the loop.
    lens = lens_ref[...]                                          # (Bp, 2)
    lane = jax.lax.broadcasted_iota(jnp.int32, (Bp, H2), 1)
    len_lane = jnp.where(lane < Hp, lens[:, 0:1], lens[:, 1:2])   # (Bp, 2Hp)

    def step(t, carry):
        h, c = carry                                              # (Bp, 2Hp) f32
        row0 = pl.multiple_of(t * Bp, 8)                          # sublane aligned
        # W_hh is read inside the loop so the MXU streams it from VMEM rather
        # than pinning a vreg-file-sized weight live across iterations.
        # TODO(synk): pltpu.matmul_push_rhs to hold W_hh across the loop.
        gates = gates_sc[pl.ds(row0, Bp), :] + jnp.dot(
            h, whh_ref[...], preferred_element_type=jnp.float32)
        # gate layout [i | f | g | o]; each block is 2*Hp = multiple of 128
        # lanes -> whole-vreg slices.
        i_g = jax.nn.sigmoid(gates[:, 0 * H2:1 * H2])
        f_g = jax.nn.sigmoid(gates[:, 1 * H2:2 * H2])
        g_g = jnp.tanh(gates[:, 2 * H2:3 * H2])
        o_g = jax.nn.sigmoid(gates[:, 3 * H2:4 * H2])
        c_new = f_g * c + i_g * g_g
        h_new = o_g * jnp.tanh(c_new)
        # packed-sequence semantics: each direction only advances while valid
        mask = t < len_lane
        return jnp.where(mask, h_new, h), jnp.where(mask, c_new, c)

    h0 = jnp.zeros((Bp, H2), jnp.float32)
    c0 = jnp.zeros((Bp, H2), jnp.float32)
    # (2) single in-kernel time loop, bounded by max valid length
    h_fin, _ = jax.lax.fori_loop(0, maxlen_ref[0], step, (h0, c0))

    # (3) fused dense head; h_fin is already concat(h_l, h_r), output lanes
    #     padded to 128 -> unmasked stores (host slices the real P columns).
    out_ref[...] = (jnp.dot(h_fin, dw_ref[...],
                            preferred_element_type=jnp.float32)
                    + db_ref[...])


def _td_lstm_pallas(maxlen, x_flat, lens, wih, whh, bias, dw, db, *, B):
    TB, E2 = x_flat.shape
    G8 = wih.shape[1]
    H2 = whh.shape[0]
    Pp = dw.shape[1]

    # Explicit scoped-VMEM budget (covers v5e 16MiB / v6e+v7x 32MiB defaults):
    # inputs+outputs double-buffered + scratch + margin, capped at 64 MiB.
    io_bytes = sum(int(a.size) * a.dtype.itemsize
                   for a in (x_flat, lens, wih, whh, bias, dw, db))
    io_bytes += B * Pp * 4
    scratch_bytes = TB * G8 * 4
    vmem_bytes = int(min(2 * io_bytes + scratch_bytes + (8 << 20), 64 << 20))

    return pl.pallas_call(
        _td_lstm_fused_kernel,
        out_shape=jax.ShapeDtypeStruct((B, Pp), jnp.float32),
        grid_spec=pltpu.PrefetchScalarGridSpec(
            num_scalar_prefetch=1,                 # maxlen -> SMEM
            grid=(1,),
            in_specs=[
                pl.BlockSpec((TB, E2), lambda i, m: (0, 0)),   # x (all steps)
                pl.BlockSpec((B, 2), lambda i, m: (0, 0)),     # lengths
                pl.BlockSpec((E2, G8), lambda i, m: (0, 0)),   # W_ih block
                pl.BlockSpec((H2, G8), lambda i, m: (0, 0)),   # W_hh block
                pl.BlockSpec((1, G8), lambda i, m: (0, 0)),    # bias
                pl.BlockSpec((H2, Pp), lambda i, m: (0, 0)),   # dense W^T
                pl.BlockSpec((1, Pp), lambda i, m: (0, 0)),    # dense b
            ],
            out_specs=pl.BlockSpec((B, Pp), lambda i, m: (0, 0)),
            scratch_shapes=[pltpu.VMEM((TB, G8), jnp.float32)],
        ),
        compiler_params=pltpu.CompilerParams(
            dimension_semantics=("arbitrary",),
            vmem_limit_bytes=vmem_bytes),
    )(maxlen, x_flat, lens, wih, whh, bias, dw, db)


# ----------------------- parameter preparation (once) -----------------------
def _pad_gate_cols(w, H, Hp):
    """w: (..., 4H) in gate order [i,f,g,o] -> (..., 4Hp), zero-pad per gate."""
    if Hp == H:
        return w
    z = jnp.zeros(w.shape[:-1] + (Hp - H,), w.dtype)
    return jnp.concatenate(
        [jnp.concatenate([w[..., k * H:(k + 1) * H], z], axis=-1)
         for k in range(4)], axis=-1)


def _interleave_lr(a, b, Hp):
    """a, b: (..., 4Hp) gate order -> (..., 8Hp) [i_a i_b | f_a f_b | ...]."""
    return jnp.concatenate(
        [blk for k in range(4)
         for blk in (a[..., k * Hp:(k + 1) * Hp], b[..., k * Hp:(k + 1) * Hp])],
        axis=-1)


def prepare_params(params):
    """Pre-transpose / block-diagonalize / pad weights once (not per call)."""
    f32 = jnp.float32
    H = params["l_w_hh"].shape[1]
    E = params["l_w_ih"].shape[1]
    P = params["dense_w"].shape[0]
    Hp = _round_up(H, 64)      # 2*Hp multiple of 128 -> whole-vreg gate slices
    Pp = _round_up(P, 128)     # lane-dense output store

    wih_l = _pad_gate_cols(jnp.transpose(params["l_w_ih"]).astype(f32), H, Hp)
    wih_r = _pad_gate_cols(jnp.transpose(params["r_w_ih"]).astype(f32), H, Hp)
    z_e = jnp.zeros((E, 4 * Hp), f32)
    # TODO(synk): the hoisted projection does 2x zero FLOPs on this block-diag
    # W_ih; could be split into two dense matmuls for very long sequences.
    wih_block = jnp.concatenate(
        [_interleave_lr(wih_l, z_e, Hp),
         _interleave_lr(z_e, wih_r, Hp)], axis=0)                 # (2E, 8Hp)

    def pad_whh(w):                                               # (4H, H) ->
        wt = _pad_gate_cols(jnp.transpose(w).astype(f32), H, Hp)  # (H, 4Hp)
        return jnp.concatenate(
            [wt, jnp.zeros((Hp - H, 4 * Hp), f32)], axis=0)       # (Hp, 4Hp)

    whh_l, whh_r = pad_whh(params["l_w_hh"]), pad_whh(params["r_w_hh"])
    z_h = jnp.zeros((Hp, 4 * Hp), f32)
    whh_block = jnp.concatenate(
        [_interleave_lr(whh_l, z_h, Hp),
         _interleave_lr(z_h, whh_r, Hp)], axis=0)                 # (2Hp, 8Hp)

    b_l = _pad_gate_cols((params["l_b_ih"] + params["l_b_hh"])
                         .astype(f32).reshape(1, 4 * H), H, Hp)
    b_r = _pad_gate_cols((params["r_b_ih"] + params["r_b_hh"])
                         .astype(f32).reshape(1, 4 * H), H, Hp)
    bias_cat = _interleave_lr(b_l, b_r, Hp)                       # (1, 8Hp)

    dw_t = jnp.transpose(params["dense_w"]).astype(f32)           # (2H, P)
    dw = jnp.zeros((2 * Hp, Pp), f32)
    dw = dw.at[0:H, 0:P].set(dw_t[0:H])
    dw = dw.at[Hp:Hp + H, 0:P].set(dw_t[H:2 * H])
    db = jnp.zeros((1, Pp), f32).at[0, 0:P].set(params["dense_b"].astype(f32))

    return {
        "embedding": params["embedding"].astype(jnp.bfloat16),    # bf16 gather
        "wih_block": wih_block.astype(jnp.bfloat16),              # bf16 MXU
        "whh_block": whh_block,                                   # f32 recurrence
        "bias": bias_cat,
        "dense_w_t": dw,
        "dense_b": db,
    }


# ----------------------------- TD_LSTM forward ------------------------------
def td_lstm_forward(prepared, x_l_tokens, x_r_tokens, *, out_dim):
    emb = prepared["embedding"]
    B, T = x_l_tokens.shape
    Bp = _round_up(max(B, 8), 8)        # sublane-aligned per-step slices

    x_l_len = jnp.sum(x_l_tokens != 0, axis=-1).astype(jnp.int32)
    x_r_len = jnp.sum(x_r_tokens != 0, axis=-1).astype(jnp.int32)
    maxlen = jnp.maximum(jnp.max(x_l_len),
                         jnp.max(x_r_len)).reshape(1).astype(jnp.int32)

    lens = jnp.zeros((Bp, 2), jnp.int32)
    lens = lens.at[:B, 0].set(x_l_len).at[:B, 1].set(x_r_len)

    pad_b = Bp - B
    xl = jnp.pad(x_l_tokens, ((0, pad_b), (0, 0)))
    xr = jnp.pad(x_r_tokens, ((0, pad_b), (0, 0)))

    # Embedding lookup directly in time-major (transpose the tiny int ids, not
    # the float embeddings); directions concatenated on the feature axis.
    # TODO(synk): fuse this gather into the kernel via SMEM ids + DMA.
    x_cat = jnp.concatenate([emb[xl.T], emb[xr.T]], axis=-1)      # (T, Bp, 2E)
    x_flat = x_cat.reshape(T * Bp, -1)                            # (T*Bp, 2E)

    out = _td_lstm_pallas(maxlen, x_flat, lens,
                          prepared["wih_block"], prepared["whh_block"],
                          prepared["bias"], prepared["dense_w_t"],
                          prepared["dense_b"], B=Bp)
    return out[:B, :out_dim]


# ----------------------------- pure-JAX reference ---------------------------
def _lstm_ref(x, lens, w_ih, w_hh, b_ih, b_hh):
    B, T, _ = x.shape
    H = w_hh.shape[1]

    def step(carry, xt_t):
        h, c = carry
        x_t, t = xt_t
        gates = x_t @ w_ih.T + b_ih + h @ w_hh.T + b_hh
        i = jax.nn.sigmoid(gates[:, 0:H])
        f = jax.nn.sigmoid(gates[:, H:2 * H])
        g = jnp.tanh(gates[:, 2 * H:3 * H])
        o = jax.nn.sigmoid(gates[:, 3 * H:4 * H])
        c_new = f * c + i * g
        h_new = o * jnp.tanh(c_new)
        m = (t < lens)[:, None]
        return (jnp.where(m, h_new, h), jnp.where(m, c_new, c)), None

    (h, _), _ = jax.lax.scan(
        step,
        (jnp.zeros((B, H), jnp.float32), jnp.zeros((B, H), jnp.float32)),
        (jnp.transpose(x, (1, 0, 2)), jnp.arange(T)))
    return h


def _td_lstm_ref(params, x_l, x_r):
    emb = params["embedding"]
    ll = jnp.sum(x_l != 0, axis=-1)
    lr = jnp.sum(x_r != 0, axis=-1)
    h_l = _lstm_ref(emb[x_l], ll, params["l_w_ih"], params["l_w_hh"],
                    params["l_b_ih"], params["l_b_hh"])
    h_r = _lstm_ref(emb[x_r], lr, params["r_w_ih"], params["r_w_hh"],
                    params["r_b_ih"], params["r_b_hh"])
    h = jnp.concatenate([h_l, h_r], axis=-1)
    return h @ params["dense_w"].T + params["dense_b"]


# ----------------------------- setup / main ---------------------------------
def make_params(key, vocab, embed_dim, hidden_dim, polarities_dim):
    ks = jax.random.split(key, 12)
    s = 1.0 / jnp.sqrt(hidden_dim)
    u = lambda k, shape, scale: jax.random.uniform(
        k, shape, jnp.float32, -scale, scale)
    return {
        "embedding": jax.random.normal(ks[0], (vocab, embed_dim), jnp.float32),
        "l_w_ih": u(ks[1], (4 * hidden_dim, embed_dim), s),
        "l_w_hh": u(ks[2], (4 * hidden_dim, hidden_dim), s),
        "l_b_ih": u(ks[3], (4 * hidden_dim,), s),
        "l_b_hh": u(ks[4], (4 * hidden_dim,), s),
        "r_w_ih": u(ks[5], (4 * hidden_dim, embed_dim), s),
        "r_w_hh": u(ks[6], (4 * hidden_dim, hidden_dim), s),
        "r_b_ih": u(ks[7], (4 * hidden_dim,), s),
        "r_b_hh": u(ks[8], (4 * hidden_dim,), s),
        "dense_w": u(ks[9], (polarities_dim, 2 * hidden_dim),
                     1.0 / jnp.sqrt(2 * hidden_dim)),
        "dense_b": u(ks[10], (polarities_dim,),
                     1.0 / jnp.sqrt(2 * hidden_dim)),
    }


if __name__ == "__main__":
    B, L = 2, 8
    VOCAB, EMBED_DIM, HIDDEN_DIM, POLARITIES = 50, 32, 32, 3

    key = jax.random.PRNGKey(0)
    k_p, k_l, k_r = jax.random.split(key, 3)
    params = make_params(k_p, VOCAB, EMBED_DIM, HIDDEN_DIM, POLARITIES)
    prepared = prepare_params(params)

    # token ids (0 = padding at the tail, as pack_padded_sequence expects)
    x_l = jax.random.randint(k_l, (B, L), 1, VOCAB, dtype=jnp.int32)
    x_r = jax.random.randint(k_r, (B, L), 1, VOCAB, dtype=jnp.int32)
    x_l = x_l.at[0, 6:].set(0).at[1, 4:].set(0)   # lengths 6, 4
    x_r = x_r.at[0, 5:].set(0).at[1, 7:].set(0)   # lengths 5, 7

    fwd = jax.jit(functools.partial(td_lstm_forward, out_dim=POLARITIES))
    out = fwd(prepared, x_l, x_r)
    jax.block_until_ready(out)
    assert out.shape == (B, POLARITIES)

    ref = _td_lstm_ref(params, x_l, x_r)
    # bf16 embedding / W_ih in the kernel vs f32 reference -> ~1e-2 tolerance
    assert jnp.allclose(out, ref, atol=2e-2, rtol=2e-2), (out, ref)
    print("KERNEL_OK")
</pallas_src>

<mosaic_0001>
module attributes {stable_mosaic.version = 11 : i64} {
  func.func @_td_lstm_fused_kernel(%arg0: i32, %arg1: memref<1xi32, #tpu.memory_space<smem>>, %arg2: memref<64x64xbf16, #tpu.memory_space<vmem>>, %arg3: memref<8x2xi32, #tpu.memory_space<vmem>>, %arg4: memref<64x512xbf16, #tpu.memory_space<vmem>>, %arg5: memref<128x512xf32, #tpu.memory_space<vmem>>, %arg6: memref<1x512xf32, #tpu.memory_space<vmem>>, %arg7: memref<128x128xf32, #tpu.memory_space<vmem>>, %arg8: memref<1x128xf32, #tpu.memory_space<vmem>>, %arg9: memref<8x128xf32, #tpu.memory_space<vmem>>, %arg10: memref<64x512xf32, #tpu.memory_space<vmem>>) attributes {dimension_semantics = [#tpu.dimension_semantics<arbitrary>], iteration_bounds = array<i64: 1>, scalar_prefetch = 1 : i64, scratch_operands = 1 : i64, tpu.core_type = #tpu.core_type<tc>, window_params = [{pipeline_mode = #tpu.pipeline_mode<synchronous>, transform_indices = @transform_0, window_bounds = array<i64: 64, 64>}, {pipeline_mode = #tpu.pipeline_mode<synchronous>, transform_indices = @transform_1, window_bounds = array<i64: 8, 2>}, {pipeline_mode = #tpu.pipeline_mode<synchronous>, transform_indices = @transform_2, window_bounds = array<i64: 64, 512>}, {pipeline_mode = #tpu.pipeline_mode<synchronous>, transform_indices = @transform_3, window_bounds = array<i64: 128, 512>}, {pipeline_mode = #tpu.pipeline_mode<synchronous>, transform_indices = @transform_4, window_bounds = array<i64: 1, 512>}, {pipeline_mode = #tpu.pipeline_mode<synchronous>, transform_indices = @transform_5, window_bounds = array<i64: 128, 128>}, {pipeline_mode = #tpu.pipeline_mode<synchronous>, transform_indices = @transform_6, window_bounds = array<i64: 1, 128>}, {pipeline_mode = #tpu.pipeline_mode<synchronous>, transform_indices = @transform_7, window_bounds = array<i64: 8, 128>}]} {
    %c0 = arith.constant 0 : index
    %c0_0 = arith.constant 0 : index
    %0 = vector.load %arg2[%c0, %c0_0] : memref<64x64xbf16, #tpu.memory_space<vmem>>, vector<64x64xbf16>
    %c0_1 = arith.constant 0 : index
    %c0_2 = arith.constant 0 : index
    %1 = vector.load %arg4[%c0_1, %c0_2] : memref<64x512xbf16, #tpu.memory_space<vmem>>, vector<64x512xbf16>
    %cst = arith.constant dense<0.000000e+00> : vector<64x512xf32>
    %2 = tpu.matmul %0, %1, %cst {dimension_numbers = #tpu.dot_dimension_numbers<[1], [0], [0], [1], [0, 0, 1, 1], [], []>} : vector<64x64xbf16>, vector<64x512xbf16>, vector<64x512xf32> -> vector<64x512xf32>
    %c0_3 = arith.constant 0 : index
    %c0_4 = arith.constant 0 : index
    %3 = vector.load %arg6[%c0_3, %c0_4] : memref<1x512xf32, #tpu.memory_space<vmem>>, vector<1x512xf32>
    %4 = vector.broadcast %3 : vector<1x512xf32> to vector<64x512xf32>
    %5 = arith.addf %2, %4 : vector<64x512xf32>
    %c0_5 = arith.constant 0 : index
    %c0_6 = arith.constant 0 : index
    %6 = vector.load %arg10[%c0_5, %c0_6] : memref<64x512xf32, #tpu.memory_space<vmem>>, vector<64x512xf32>
    tpu.vector_store %arg10[%c0_5, %c0_6], %5 {strides = array<i32>} : memref<64x512xf32, #tpu.memory_space<vmem>>, vector<64x512xf32>,
    %c0_7 = arith.constant 0 : index
    %c0_8 = arith.constant 0 : index
    %7 = vector.load %arg3[%c0_7, %c0_8] : memref<8x2xi32, #tpu.memory_space<vmem>>, vector<8x2xi32>
    %8 = tpu.iota {dimensions = array<i32: 1>} : vector<8x128xi32>
    %c64_i32 = arith.constant 64 : i32
    %9 = vector.broadcast %c64_i32 : i32 to vector<8x128xi32>
    %10 = arith.cmpi slt, %8, %9 : vector<8x128xi32>
    %11 = vector.extract_strided_slice %7 {offsets = [0, 0], sizes = [8, 1], strides = [1, 1]} : vector<8x2xi32> to vector<8x1xi32>
    %12 = vector.extract_strided_slice %7 {offsets = [0, 1], sizes = [8, 1], strides = [1, 1]} : vector<8x2xi32> to vector<8x1xi32>
    %13 = vector.shape_cast %11 : vector<8x1xi32> to vector<8x1xi32>
    %14 = vector.broadcast %13 : vector<8x1xi32> to vector<8x128xi32>
    %15 = vector.shape_cast %12 : vector<8x1xi32> to vector<8x1xi32>
    %16 = vector.broadcast %15 : vector<8x1xi32> to vector<8x128xi32>
    %17 = arith.select %10, %14, %16 : vector<8x128xi1>, vector<8x128xi32>
    %cst_9 = arith.constant 0.000000e+00 : f32
    %18 = vector.broadcast %cst_9 : f32 to vector<8x128xf32>
    %cst_10 = arith.constant 0.000000e+00 : f32
    %19 = vector.broadcast %cst_10 : f32 to vector<8x128xf32>
    %c0_11 = arith.constant 0 : index
    %20 = memref.load %arg1[%c0_11] : memref<1xi32, #tpu.memory_space<smem>>
    %c0_i32 = arith.constant 0 : i32
    %21 = arith.subi %20, %c0_i32 : i32
    %22 = arith.addi %c0_i32, %21 : i32
    %c1_i32 = arith.constant 1 : i32
    %23:2 = scf.for %arg11 = %c0_i32 to %22 step %c1_i32 iter_args(%arg12 = %18, %arg13 = %19) -> (vector<8x128xf32>, vector<8x128xf32>)  : i32 {
      %c8_i32 = arith.constant 8 : i32
      %30 = arith.muli %arg11, %c8_i32 : i32
      %31 = tpu.assume_multiple %30, 8 : i32
      %32 = arith.index_cast %31 : i32 to index
      %c0_19 = arith.constant 0 : index
      %33 = vector.load %arg10[%32, %c0_19] : memref<64x512xf32, #tpu.memory_space<vmem>>, vector<8x512xf32>
      %c0_20 = arith.constant 0 : index
      %c0_21 = arith.constant 0 : index
      %34 = vector.load %arg5[%c0_20, %c0_21] : memref<128x512xf32, #tpu.memory_space<vmem>>, vector<128x512xf32>
      %cst_22 = arith.constant dense<0.000000e+00> : vector<8x512xf32>
      %35 = tpu.matmul %arg12, %34, %cst_22 {dimension_numbers = #tpu.dot_dimension_numbers<[1], [0], [0], [1], [0, 0, 1, 1], [], []>} : vector<8x128xf32>, vector<128x512xf32>, vector<8x512xf32> -> vector<8x512xf32>
      %36 = arith.addf %33, %35 : vector<8x512xf32>
      %37 = vector.extract_strided_slice %36 {offsets = [0, 0], sizes = [8, 128], strides = [1, 1]} : vector<8x512xf32> to vector<8x128xf32>
      %38 = arith.negf %37 : vector<8x128xf32>
      %39 = math.exp %38 : vector<8x128xf32>
      %cst_23 = arith.constant 1.000000e+00 : f32
      %40 = vector.broadcast %cst_23 : f32 to vector<8x128xf32>
      %41 = arith.addf %40, %39 : vector<8x128xf32>
      %42 = arith.divf %40, %41 : vector<8x128xf32>
      %43 = vector.extract_strided_slice %36 {offsets = [0, 128], sizes = [8, 128], strides = [1, 1]} : vector<8x512xf32> to vector<8x128xf32>
      %44 = arith.negf %43 : vector<8x128xf32>
      %45 = math.exp %44 : vector<8x128xf32>
      %cst_24 = arith.constant 1.000000e+00 : f32
      %46 = vector.broadcast %cst_24 : f32 to vector<8x128xf32>
      %47 = arith.addf %46, %45 : vector<8x128xf32>
      %48 = arith.divf %46, %47 : vector<8x128xf32>
      %49 = vector.extract_strided_slice %36 {offsets = [0, 256], sizes = [8, 128], strides = [1, 1]} : vector<8x512xf32> to vector<8x128xf32>
      %50 = math.tanh %49 : vector<8x128xf32>
      %51 = vector.extract_strided_slice %36 {offsets = [0, 384], sizes = [8, 128], strides = [1, 1]} : vector<8x512xf32> to vector<8x128xf32>
      %52 = arith.negf %51 : vector<8x128xf32>
      %53 = math.exp %52 : vector<8x128xf32>
      %cst_25 = arith.constant 1.000000e+00 : f32
      %54 = vector.broadcast %cst_25 : f32 to vector<8x128xf32>
      %55 = arith.addf %54, %53 : vector<8x128xf32>
      %56 = arith.divf %54, %55 : vector<8x128xf32>
      %57 = arith.mulf %48, %arg13 : vector<8x128xf32>
      %58 = arith.mulf %42, %50 : vector<8x128xf32>
      %59 = arith.addf %57, %58 : vector<8x128xf32>
      %60 = math.tanh %59 : vector<8x128xf32>
      %61 = arith.mulf %56, %60 : vector<8x128xf32>
      %62 = vector.broadcast %arg11 : i32 to vector<8x128xi32>
      %63 = arith.cmpi slt, %62, %17 : vector<8x128xi32>
      %64 = arith.select %63, %61, %arg12 : vector<8x128xi1>, vector<8x128xf32>
      %65 = arith.select %63, %59, %arg13 : vector<8x128xi1>, vector<8x128xf32>
      scf.yield %64, %65 : vector<8x128xf32>, vector<8x128xf32>
    }
    %c0_12 = arith.constant 0 : index
    %c0_13 = arith.constant 0 : index
    %24 = vector.load %arg7[%c0_12, %c0_13] : memref<128x128xf32, #tpu.memory_space<vmem>>, vector<128x128xf32>
    %cst_14 = arith.constant dense<0.000000e+00> : vector<8x128xf32>
    %25 = tpu.matmul %23#0, %24, %cst_14 {dimension_numbers = #tpu.dot_dimension_numbers<[1], [0], [0], [1], [0, 0, 1, 1], [], []>} : vector<8x128xf32>, vector<128x128xf32>, vector<8x128xf32> -> vector<8x128xf32>
    %c0_15 = arith.constant 0 : index
    %c0_16 = arith.constant 0 : index
    %26 = vector.load %arg8[%c0_15, %c0_16] : memref<1x128xf32, #tpu.memory_space<vmem>>, vector<1x128xf32>
    %27 = vector.broadcast %26 : vector<1x128xf32> to vector<8x128xf32>
    %28 = arith.addf %25, %27 : vector<8x128xf32>
    %c0_17 = arith.constant 0 : index
    %c0_18 = arith.constant 0 : index
    %29 = vector.load %arg9[%c0_17, %c0_18] : memref<8x128xf32, #tpu.memory_space<vmem>>, vector<8x128xf32>
    tpu.vector_store %arg9[%c0_17, %c0_18], %28 {strides = array<i32>} : memref<8x128xf32, #tpu.memory_space<vmem>>, vector<8x128xf32>,
    return
  }
  func.func @transform_0(%arg0: i32, %arg1: memref<1xi32, #tpu.memory_space<smem>>) -> (i32, i32) {
    %c0_i32 = arith.constant 0 : i32
    %c0_i32_0 = arith.constant 0 : i32
    %c0_i32_1 = arith.constant 0 : i32
    return %c0_i32, %c0_i32_0 : i32, i32
  }
  func.func @transform_1(%arg0: i32, %arg1: memref<1xi32, #tpu.memory_space<smem>>) -> (i32, i32) {
    %c0_i32 = arith.constant 0 : i32
    %c0_i32_0 = arith.constant 0 : i32
    %c0_i32_1 = arith.constant 0 : i32
    return %c0_i32, %c0_i32_0 : i32, i32
  }
  func.func @transform_2(%arg0: i32, %arg1: memref<1xi32, #tpu.memory_space<smem>>) -> (i32, i32) {
    %c0_i32 = arith.constant 0 : i32
    %c0_i32_0 = arith.constant 0 : i32
    %c0_i32_1 = arith.constant 0 : i32
    return %c0_i32, %c0_i32_0 : i32, i32
  }
  func.func @transform_3(%arg0: i32, %arg1: memref<1xi32, #tpu.memory_space<smem>>) -> (i32, i32) {
    %c0_i32 = arith.constant 0 : i32
    %c0_i32_0 = arith.constant 0 : i32
    %c0_i32_1 = arith.constant 0 : i32
    return %c0_i32, %c0_i32_0 : i32, i32
  }
  func.func @transform_4(%arg0: i32, %arg1: memref<1xi32, #tpu.memory_space<smem>>) -> (i32, i32) {
    %c0_i32 = arith.constant 0 : i32
    %c0_i32_0 = arith.constant 0 : i32
    %c0_i32_1 = arith.constant 0 : i32
    return %c0_i32, %c0_i32_0 : i32, i32
  }
  func.func @transform_5(%arg0: i32, %arg1: memref<1xi32, #tpu.memory_space<smem>>) -> (i32, i32) {
    %c0_i32 = arith.constant 0 : i32
    %c0_i32_0 = arith.constant 0 : i32
    %c0_i32_1 = arith.constant 0 : i32
    return %c0_i32, %c0_i32_0 : i32, i32
  }
  func.func @transform_6(%arg0: i32, %arg1: memref<1xi32, #tpu.memory_space<smem>>) -> (i32, i32) {
    %c0_i32 = arith.constant 0 : i32
    %c0_i32_0 = arith.constant 0 : i32
    %c0_i32_1 = arith.constant 0 : i32
    return %c0_i32, %c0_i32_0 : i32, i32
  }
  func.func @transform_7(%arg0: i32, %arg1: memref<1xi32, #tpu.memory_space<smem>>) -> (i32, i32) {
    %c0_i32 = arith.constant 0 : i32
    %c0_i32_0 = arith.constant 0 : i32
    %c0_i32_1 = arith.constant 0 : i32
    return %c0_i32, %c0_i32_0 : i32, i32
  }
}

</mosaic_0001>

<llo_original>
// kernel: td_lstm_forward.1
$region0: #{td_lstm_forward.1}
  #allocation0 [shape = 'u32[]', space=smem, size = 0x4, offset = 0x4, fixed_abs, tag = 'smem constant byte address 0x4 - core index']
  #allocation1 [shape = 'u32[144,128]{1,0:T(1,128)}', space=vmem, size = 0x12000, scoped, tag = 'internal scratch']
  #allocation2 [shape = 'f32[64,512]{1,0:T(8,128)}', space=vmem, size = 0x20000, scoped, tag = 'scratch operand']
  #allocation3 [shape = 's32[1]{0}', space=sflag, size = 0x4, scoped, tag = 'scoped memory for td_lstm_forward.1']
  #allocation4 [shape = 's32[1]{0:T(128)S(6)}', space=smem, size = 0x200, scoped, tag = 'prefetched SMEM operand 0']
  %s0 = inlined_call_operand.<no memory space> [shape: s32[1], index: 0, kind: input, shape index: {}]
  %s1 = inlined_call_operand.vmem [shape: bf16[64,64], index: 1, kind: input, shape index: {}]
  %s2 = inlined_call_operand.vmem [shape: s32[8,2], index: 2, kind: input, shape index: {}]
  %s3 = inlined_call_operand.vmem [shape: bf16[64,512], index: 3, kind: input, shape index: {}]
  %s4 = inlined_call_operand.vmem [shape: f32[128,512], index: 4, kind: input, shape index: {}]
  %s5 = inlined_call_operand.vmem [shape: f32[1,512], index: 5, kind: input, shape index: {}]
  %s6 = inlined_call_operand.vmem [shape: f32[128,128], index: 6, kind: input, shape index: {}]
  %s7 = inlined_call_operand.vmem [shape: f32[1,128], index: 7, kind: input, shape index: {}]
  %s8 = inlined_call_operand.vmem [shape: f32[8,128], index: 8, kind: output, shape index: {}]
  %s9 = sld [smem:[#allocation0]]
  $region45: #{td_lstm_forward.1} parent=0
    _
  %s11 = ssub.s32 1, %s9
  %s12 = scalar_select 0, %s11, %s9
  %13 = sst [smem:[#allocation4]] %s0
  // Predicated region
  $region2: #{td_lstm_forward.1} parent=0 // pred_check
    _
  $region3: #{td_lstm_forward.1} parent=0 // pred_check_branch
    %15 = sbr.rel (0) target = $region5
  $region4: #{td_lstm_forward.1} parent=0 // pred_region
    _
  $region5: #{td_lstm_forward.1} parent=0 // pred_fallthru
    _
  // Predicated region
  $region6: #{td_lstm_forward.1} parent=0 // pred_check
    _
  $region7: #{td_lstm_forward.1} parent=0 // pred_check_branch
    %17 = sbr.rel (0) target = $region9
  $region8: #{td_lstm_forward.1} parent=0 // pred_region
    _
  $region9: #{td_lstm_forward.1} parent=0 // pred_fallthru
    _
  // Predicated region
  $region10: #{td_lstm_forward.1} parent=0 // pred_check
    _
  $region11: #{td_lstm_forward.1} parent=0 // pred_check_branch
    %19 = sbr.rel (0) target = $region13
  $region12: #{td_lstm_forward.1} parent=0 // pred_region
    _
  $region13: #{td_lstm_forward.1} parent=0 // pred_fallthru
    _
  // Predicated region
  $region14: #{td_lstm_forward.1} parent=0 // pred_check
    _
  $region15: #{td_lstm_forward.1} parent=0 // pred_check_branch
    %21 = sbr.rel (0) target = $region17
  $region16: #{td_lstm_forward.1} parent=0 // pred_region
    _
  $region17: #{td_lstm_forward.1} parent=0 // pred_fallthru
    _
  // Predicated region
  $region18: #{td_lstm_forward.1} parent=0 // pred_check
    _
  $region19: #{td_lstm_forward.1} parent=0 // pred_check_branch
    %23 = sbr.rel (0) target = $region21
  $region20: #{td_lstm_forward.1} parent=0 // pred_region
    _
  $region21: #{td_lstm_forward.1} parent=0 // pred_fallthru
    _
  // Predicated region
  $region22: #{td_lstm_forward.1} parent=0 // pred_check
    _
  $region23: #{td_lstm_forward.1} parent=0 // pred_check_branch
    %25 = sbr.rel (0) target = $region25
  $region24: #{td_lstm_forward.1} parent=0 // pred_region
    _
  $region25: #{td_lstm_forward.1} parent=0 // pred_fallthru
    _
  // Predicated region
  $region26: #{td_lstm_forward.1} parent=0 // pred_check
    _
  $region27: #{td_lstm_forward.1} parent=0 // pred_check_branch
    %27 = sbr.rel (0) target = $region29
  $region28: #{td_lstm_forward.1} parent=0 // pred_region
    _
  $region29: #{td_lstm_forward.1} parent=0 // pred_fallthru
    _
  %v29 = vld [vmem:[%s1] sm:$0xf]
  %v30 = vld [vmem:[%s1 + $0x4] sm:$0xf]
  %v31 = vld [vmem:[%s1 + $0x8] sm:$0xf]
  %v32 = vld [vmem:[%s1 + $0xc] sm:$0xf]
  %v33 = vld [vmem:[%s1 + $0x10] sm:$0xf]
  %v34 = vld [vmem:[%s1 + $0x14] sm:$0xf]
  %v35 = vld [vmem:[%s1 + $0x18] sm:$0xf]
  %v36 = vld [vmem:[%s1 + $0x1c] sm:$0xf]
  %v37 = vld [vmem:[%s3] sm:$0xff]
  %v38 = vld [vmem:[%s3 + $0x8] sm:$0xff]
  %v39 = vld [vmem:[%s3 + $0x10] sm:$0xff]
  %v40 = vld [vmem:[%s3 + $0x18] sm:$0xff]
  %v41 = vld [vmem:[%s3 + $0x20] sm:$0xff]
  %v42 = vld [vmem:[%s3 + $0x28] sm:$0xff]
  %v43 = vld [vmem:[%s3 + $0x30] sm:$0xff]
  %v44 = vld [vmem:[%s3 + $0x38] sm:$0xff]
  %v45 = vld [vmem:[%s3 + $0x40] sm:$0xff]
  %v46 = vld [vmem:[%s3 + $0x48] sm:$0xff]
  %v47 = vld [vmem:[%s3 + $0x50] sm:$0xff]
  %v48 = vld [vmem:[%s3 + $0x58] sm:$0xff]
  %v49 = vld [vmem:[%s3 + $0x60] sm:$0xff]
  %v50 = vld [vmem:[%s3 + $0x68] sm:$0xff]
  %v51 = vld [vmem:[%s3 + $0x70] sm:$0xff]
  %v52 = vld [vmem:[%s3 + $0x78] sm:$0xff]
  %v53 = vld [vmem:[%s5] sm:$0xf]
  %v55 = vlaneseq
  %v56 = vshrl.u32 %v55, 7
  %v57 = vsub.s32 0, %v56
  %v58 = vrot.slane %v53, %v57
  %v59 = vlaneseq
  %v60 = vshrl.u32 %v59, 7
  %v61 = vsub.s32 1, %v60
  %v62 = vrot.slane %v53, %v61
  %v63 = vlaneseq
  %v64 = vshrl.u32 %v63, 7
  %v65 = vsub.s32 2, %v64
  %v66 = vrot.slane %v53, %v65
  %v67 = vlaneseq
  %v68 = vshrl.u32 %v67, 7
  %v69 = vsub.s32 3, %v68
  %v70 = vrot.slane %v53, %v69
  %v83 = vunpack.c.l.b16 %v29
  %v84 = vunpack.c.l.b16 %v30
  %v85 = vunpack.c.l.b16 %v31
  %v86 = vunpack.c.l.b16 %v32
  %v87 = vunpack.c.l.b16 %v33
  %v88 = vunpack.c.l.b16 %v34
  %v89 = vunpack.c.l.b16 %v35
  %v90 = vunpack.c.l.b16 %v36
  %v91 = vpack.c.b16 %v84, %v83
  %v92 = vpack.c.b16 %v86, %v85
  %v93 = vpack.c.b16 %v88, %v87
  %v94 = vpack.c.b16 %v90, %v89
  %v111 = vunpack.c.l.b16 %v37
  %v112 = vunpack.c.h.b16 %v37
  %v113 = vunpack.c.l.b16 %v38
  %v114 = vunpack.c.h.b16 %v38
  %v115 = vunpack.c.l.b16 %v39
  %v116 = vunpack.c.h.b16 %v39
  %v117 = vunpack.c.l.b16 %v40
  %v118 = vunpack.c.h.b16 %v40
  %v119 = vunpack.c.l.b16 %v41
  %v120 = vunpack.c.h.b16 %v41
  %v121 = vunpack.c.l.b16 %v42
  %v122 = vunpack.c.h.b16 %v42
  %v123 = vunpack.c.l.b16 %v43
  %v124 = vunpack.c.h.b16 %v43
  %v125 = vunpack.c.l.b16 %v44
  %v126 = vunpack.c.h.b16 %v44
  %v127 = vunpack.c.l.b16 %v45
  %v128 = vunpack.c.h.b16 %v45
  %v129 = vunpack.c.l.b16 %v46
  %v130 = vunpack.c.h.b16 %v46
  %v131 = vunpack.c.l.b16 %v47
  %v132 = vunpack.c.h.b16 %v47
  %v133 = vunpack.c.l.b16 %v48
  %v134 = vunpack.c.h.b16 %v48
  %v135 = vunpack.c.l.b16 %v49
  %v136 = vunpack.c.h.b16 %v49
  %v137 = vunpack.c.l.b16 %v50
  %v138 = vunpack.c.h.b16 %v50
  %v139 = vunpack.c.l.b16 %v51
  %v140 = vunpack.c.h.b16 %v51
  %v141 = vunpack.c.l.b16 %v52
  %v142 = vunpack.c.h.b16 %v52
  %v143 = vpack.c.b16 %v115, %v111
  %v144 = vpack.c.b16 %v116, %v112
  %v145 = vpack.c.b16 %v117, %v113
  %v146 = vpack.c.b16 %v118, %v114
  %v147 = vpack.c.b16 %v123, %v119
  %v148 = vpack.c.b16 %v124, %v120
  %v149 = vpack.c.b16 %v125, %v121
  %v150 = vpack.c.b16 %v126, %v122
  %v151 = vpack.c.b16 %v131, %v127
  %v152 = vpack.c.b16 %v132, %v128
  %v153 = vpack.c.b16 %v133, %v129
  %v154 = vpack.c.b16 %v134, %v130
  %v155 = vpack.c.b16 %v139, %v135
  %v156 = vpack.c.b16 %v140, %v136
  %v157 = vpack.c.b16 %v141, %v137
  %v158 = vpack.c.b16 %v142, %v138
  %vm175 = vcmask 523264
  %v177 = vsel %vm175, %v91, 0
  %v180 = vsel %vm175, %v92, 0
  %v183 = vsel %vm175, %v93, 0
  %v186 = vsel %vm175, %v94, 0
  %188 = vmatprep.subr.bf16.mxu0 %v144
  %189 = vmatpush1.bf16.msra.mxu0 %v143
  %190 = vmatprep.subr.bf16.mxu0 %v148
  %191 = vmatpush1.bf16.msra.mxu0 %v147
  %192 = vmatprep.subr.bf16.mxu0 %v152
  %193 = vmatpush1.bf16.msra.mxu0 %v151
  %194 = vmatprep.subr.bf16.mxu0 %v156
  %195 = vmatpush1.bf16.msra.mxu0 %v155
  %196 = vmatprep.subr.bf16.mxu0 0
  %197 = vmatpush1.bf16.msra.mxu0 0
  %198 = vmatprep.subr.bf16.mxu0 0
  %199 = vmatpush1.bf16.msra.mxu0 0
  %200 = vmatprep.subr.bf16.mxu0 0
  %201 = vmatpush1.bf16.msra.mxu0 0
  %202 = vmatprep.subr.bf16.mxu0 0
  %203 = vmatpush1.bf16.msra.mxu0 0
  %204 = vmatprep.subr.bf16.mxu0 0
  %205 = vmatpush1.bf16.msra.mxu0 0
  %206 = vmatprep.subr.bf16.mxu0 0
  %207 = vmatpush1.bf16.msra.mxu0 0
  %208 = vmatprep.subr.bf16.mxu0 0
  %209 = vmatpush1.bf16.msra.mxu0 0
  %210 = vmatprep.subr.bf16.mxu0 0
  %211 = vmatpush1.bf16.msra.mxu0 0
  %212 = vmatprep.subr.bf16.mxu0 0
  %213 = vmatpush1.bf16.msra.mxu0 0
  %214 = vmatprep.subr.bf16.mxu0 0
  %215 = vmatpush1.bf16.msra.mxu0 0
  %216 = vmatprep.subr.bf16.mxu0 0
  %217 = vmatpush1.bf16.msra.mxu0 0
  %218 = vmatprep.subr.bf16.mxu0 0
  %219 = vmatpush1.bf16.msra.mxu0 0
  %220 = vmatprep.mubr.bf16.mxu0 0
  %221 = vmatmul.mubr.bf16.gmra.mrb[0].mxu0 %v177
  %v222 = vpop.f32.mrb[0].mxu0
  %v223 = vadd.f32 %v58, %v222
  %v224 = vpop.f32.mrb[0].mxu0
  %v225 = vadd.f32 %v62, %v224
  %v226 = vpop.f32.mrb[0].mxu0
  %v227 = vadd.f32 %v58, %v226
  %v228 = vpop.f32.mrb[0].mxu0
  %v229 = vadd.f32 %v62, %v228
  %230 = vmatprep.mubr.bf16.mxu0 0
  %231 = vmatmul.mubr.bf16.gmra.mrb[0].mxu0 %v180
  %v232 = vpop.f32.mrb[0].mxu0
  %v233 = vadd.f32 %v58, %v232
  %v234 = vpop.f32.mrb[0].mxu0
  %v235 = vadd.f32 %v62, %v234
  %v236 = vpop.f32.mrb[0].mxu0
  %v237 = vadd.f32 %v58, %v236
  %v238 = vpop.f32.mrb[0].mxu0
  %v239 = vadd.f32 %v62, %v238
  %240 = vmatprep.mubr.bf16.mxu0 0
  %241 = vmatmul.mubr.bf16.gmra.mrb[0].mxu0 %v183
  %v242 = vpop.f32.mrb[0].mxu0
  %v243 = vadd.f32 %v58, %v242
  %v244 = vpop.f32.mrb[0].mxu0
  %v245 = vadd.f32 %v62, %v244
  %v246 = vpop.f32.mrb[0].mxu0
  %v247 = vadd.f32 %v58, %v246
  %v248 = vpop.f32.mrb[0].mxu0
  %v249 = vadd.f32 %v62, %v248
  %250 = vmatprep.mubr.bf16.mxu0 0
  %251 = vmatmul.mubr.bf16.gmra.mrb[0].mxu0 %v186
  %v252 = vpop.f32.mrb[0].mxu0
  %v253 = vadd.f32 %v58, %v252
  %v254 = vpop.f32.mrb[0].mxu0
  %v255 = vadd.f32 %v62, %v254
  %v256 = vpop.f32.mrb[0].mxu0
  %v257 = vadd.f32 %v58, %v256
  %v258 = vpop.f32.mrb[0].mxu0
  %v259 = vadd.f32 %v62, %v258
  %260 = vdwg.mxu0
  %261 = vmatprep.subr.bf16.mxu0 %v146
  %262 = vmatpush1.bf16.msra.mxu0 %v145
  %263 = vmatprep.subr.bf16.mxu0 %v150
  %264 = vmatpush1.bf16.msra.mxu0 %v149
  %265 = vmatprep.subr.bf16.mxu0 %v154
  %266 = vmatpush1.bf16.msra.mxu0 %v153
  %267 = vmatprep.subr.bf16.mxu0 %v158
  %268 = vmatpush1.bf16.msra.mxu0 %v157
  %269 = vmatprep.subr.bf16.mxu0 0
  %270 = vmatpush1.bf16.msra.mxu0 0
  %271 = vmatprep.subr.bf16.mxu0 0
  %272 = vmatpush1.bf16.msra.mxu0 0
  %273 = vmatprep.subr.bf16.mxu0 0
  %274 = vmatpush1.bf16.msra.mxu0 0
  %275 = vmatprep.subr.bf16.mxu0 0
  %276 = vmatpush1.bf16.msra.mxu0 0
  %277 = vmatprep.subr.bf16.mxu0 0
  %278 = vmatpush1.bf16.msra.mxu0 0
  %279 = vmatprep.subr.bf16.mxu0 0
  %280 = vmatpush1.bf16.msra.mxu0 0
  %281 = vmatprep.subr.bf16.mxu0 0
  %282 = vmatpush1.bf16.msra.mxu0 0
  %283 = vmatprep.subr.bf16.mxu0 0
  %284 = vmatpush1.bf16.msra.mxu0 0
  %285 = vmatprep.subr.bf16.mxu0 0
  %286 = vmatpush1.bf16.msra.mxu0 0
  %287 = vmatprep.subr.bf16.mxu0 0
  %288 = vmatpush1.bf16.msra.mxu0 0
  %289 = vmatprep.subr.bf16.mxu0 0
  %290 = vmatpush1.bf16.msra.mxu0 0
  %291 = vmatprep.subr.bf16.mxu0 0
  %292 = vmatpush1.bf16.msra.mxu0 0
  %293 = vmatprep.mubr.bf16.mxu0 0
  %294 = vmatmul.mubr.bf16.gmra.mrb[0].mxu0 %v177
  %v295 = vpop.f32.mrb[0].mxu0
  %v296 = vadd.f32 %v66, %v295
  %v297 = vpop.f32.mrb[0].mxu0
  %v298 = vadd.f32 %v70, %v297
  %v299 = vpop.f32.mrb[0].mxu0
  %v300 = vadd.f32 %v66, %v299
  %v301 = vpop.f32.mrb[0].mxu0
  %v302 = vadd.f32 %v70, %v301
  %303 = vmatprep.mubr.bf16.mxu0 0
  %304 = vmatmul.mubr.bf16.gmra.mrb[0].mxu0 %v180
  %v305 = vpop.f32.mrb[0].mxu0
  %v306 = vadd.f32 %v66, %v305
  %v307 = vpop.f32.mrb[0].mxu0
  %v308 = vadd.f32 %v70, %v307
  %v309 = vpop.f32.mrb[0].mxu0
  %v310 = vadd.f32 %v66, %v309
  %v311 = vpop.f32.mrb[0].mxu0
  %v312 = vadd.f32 %v70, %v311
  %313 = vmatprep.mubr.bf16.mxu0 0
  %314 = vmatmul.mubr.bf16.gmra.mrb[0].mxu0 %v183
  %v315 = vpop.f32.mrb[0].mxu0
  %v316 = vadd.f32 %v66, %v315
  %v317 = vpop.f32.mrb[0].mxu0
  %v318 = vadd.f32 %v70, %v317
  %v319 = vpop.f32.mrb[0].mxu0
  %v320 = vadd.f32 %v66, %v319
  %v321 = vpop.f32.mrb[0].mxu0
  %v322 = vadd.f32 %v70, %v321
  %323 = vmatprep.mubr.bf16.mxu0 0
  %324 = vmatmul.mubr.bf16.gmra.mrb[0].mxu0 %v186
  %v325 = vpop.f32.mrb[0].mxu0
  %v326 = vadd.f32 %v66, %v325
  %v327 = vpop.f32.mrb[0].mxu0
  %v328 = vadd.f32 %v70, %v327
  %v329 = vpop.f32.mrb[0].mxu0
  %v330 = vadd.f32 %v66, %v329
  %v331 = vpop.f32.mrb[0].mxu0
  %v332 = vadd.f32 %v70, %v331
  %333 = vdwg.mxu0
  %334 = vst [vmem:[#allocation2] sm:$0xff] %v223
  %335 = vst [vmem:[#allocation2 + $0x8] sm:$0xff] %v225
  %336 = vst [vmem:[#allocation2 + $0x10] sm:$0xff] %v296
  %337 = vst [vmem:[#allocation2 + $0x18] sm:$0xff] %v298
  %338 = vst [vmem:[#allocation2 + $0x20] sm:$0xff] %v227
  %339 = vst [vmem:[#allocation2 + $0x28] sm:$0xff] %v229
  %340 = vst [vmem:[#allocation2 + $0x30] sm:$0xff] %v300
  %341 = vst [vmem:[#allocation2 + $0x38] sm:$0xff] %v302
  %342 = vst [vmem:[#allocation2 + $0x40] sm:$0xff] %v233
  %343 = vst [vmem:[#allocation2 + $0x48] sm:$0xff] %v235
  %344 = vst [vmem:[#allocation2 + $0x50] sm:$0xff] %v306
  %345 = vst [vmem:[#allocation2 + $0x58] sm:$0xff] %v308
  %346 = vst [vmem:[#allocation2 + $0x60] sm:$0xff] %v237
  %347 = vst [vmem:[#allocation2 + $0x68] sm:$0xff] %v239
  %348 = vst [vmem:[#allocation2 + $0x70] sm:$0xff] %v310
  %349 = vst [vmem:[#allocation2 + $0x78] sm:$0xff] %v312
  %350 = vst [vmem:[#allocation2 + $0x80] sm:$0xff] %v243
  %351 = vst [vmem:[#allocation2 + $0x88] sm:$0xff] %v245
  %352 = vst [vmem:[#allocation2 + $0x90] sm:$0xff] %v316
  %353 = vst [vmem:[#allocation2 + $0x98] sm:$0xff] %v318
  %354 = vst [vmem:[#allocation2 + $0xa0] sm:$0xff] %v247
  %355 = vst [vmem:[#allocation2 + $0xa8] sm:$0xff] %v249
  %356 = vst [vmem:[#allocation2 + $0xb0] sm:$0xff] %v320
  %357 = vst [vmem:[#allocation2 + $0xb8] sm:$0xff] %v322
  %358 = vst [vmem:[#allocation2 + $0xc0] sm:$0xff] %v253
  %359 = vst [vmem:[#allocation2 + $0xc8] sm:$0xff] %v255
  %360 = vst [vmem:[#allocation2 + $0xd0] sm:$0xff] %v326
  %361 = vst [vmem:[#allocation2 + $0xd8] sm:$0xff] %v328
  %362 = vst [vmem:[#allocation2 + $0xe0] sm:$0xff] %v257
  %363 = vst [vmem:[#allocation2 + $0xe8] sm:$0xff] %v259
  %364 = vst [vmem:[#allocation2 + $0xf0] sm:$0xff] %v330
  %365 = vst [vmem:[#allocation2 + $0xf8] sm:$0xff] %v332
  %v366 = vld [vmem:[%s2] sm:$0xff]
  %v367 = vlaneseq
  %v368 = vand.u32 %v367, 127
  %vm369 = vcmp.lt.s32.totalorder %v368, 64
  %370 = vset.pattern.permute.xlu0 0
  %371 = vperm.xlu0 %370, %v366
  %v372 = vpop.permute.xlu0 %371
  %373 = vset.pattern.permute.xlu0 1
  %374 = vperm.xlu0 %373, %v366
  %v375 = vpop.permute.xlu0 %374
  %v376 = vsel %vm369, %v372, %v375
  %s377 = sld [smem:[#allocation4]]
  // While loop
  $region30: #{td_lstm_forward.1} parent=0 // loop_pre_header
    _
  $region31: #{td_lstm_forward.1} parent=0 // loop_header
    %s379 = sphi 0, %s381
    %p380 = scmp.ge.s32.totalorder %s379, %s377
    %v384 = vphi 0.0, %v632
    %v385 = vphi 0.0, %v633
  $region32: #{td_lstm_forward.1} parent=0 // loop_header_branch
    %383 = sbr.rel (%p380) target = $region36
  $region33: #{td_lstm_forward.1} parent=0 // loop_body
    %s386 = smul.u32 %s379, 8
    %s387 = sshra.s32 %s386, 3
    %s388 = sand.u32 %s386, 7
    %s389 = smul.u32 %s387, 4
    %s390 = smul.addr %s389, 8
    %s391 = scalar_lea.vmem [#allocation2], %s390
    %v392 = vld [vmem:[%s391] sm:$0xff]
    %v393 = vld [vmem:[%s391 + $0x8] sm:$0xff]
    %v394 = vld [vmem:[%s391 + $0x10] sm:$0xff]
    %v395 = vld [vmem:[%s391 + $0x18] sm:$0xff]
    %v396 = vld [vmem:[%s4] sm:$0xff]
    %v397 = vld [vmem:[%s4 + $0x8] sm:$0xff]
    %v398 = vld [vmem:[%s4 + $0x10] sm:$0xff]
    %v399 = vld [vmem:[%s4 + $0x18] sm:$0xff]
    %v400 = vld [vmem:[%s4 + $0x20] sm:$0xff]
    %v401 = vld [vmem:[%s4 + $0x28] sm:$0xff]
    %v402 = vld [vmem:[%s4 + $0x30] sm:$0xff]
    %v403 = vld [vmem:[%s4 + $0x38] sm:$0xff]
    %v404 = vld [vmem:[%s4 + $0x40] sm:$0xff]
    %v405 = vld [vmem:[%s4 + $0x48] sm:$0xff]
    %v406 = vld [vmem:[%s4 + $0x50] sm:$0xff]
    %v407 = vld [vmem:[%s4 + $0x58] sm:$0xff]
    %v408 = vld [vmem:[%s4 + $0x60] sm:$0xff]
    %v409 = vld [vmem:[%s4 + $0x68] sm:$0xff]
    %v410 = vld [vmem:[%s4 + $0x70] sm:$0xff]
    %v411 = vld [vmem:[%s4 + $0x78] sm:$0xff]
    %v412 = vld [vmem:[%s4 + $0x80] sm:$0xff]
    %v413 = vld [vmem:[%s4 + $0x88] sm:$0xff]
    %v414 = vld [vmem:[%s4 + $0x90] sm:$0xff]
    %v415 = vld [vmem:[%s4 + $0x98] sm:$0xff]
    %v416 = vld [vmem:[%s4 + $0xa0] sm:$0xff]
    %v417 = vld [vmem:[%s4 + $0xa8] sm:$0xff]
    %v418 = vld [vmem:[%s4 + $0xb0] sm:$0xff]
    %v419 = vld [vmem:[%s4 + $0xb8] sm:$0xff]
    %v420 = vld [vmem:[%s4 + $0xc0] sm:$0xff]
    %v421 = vld [vmem:[%s4 + $0xc8] sm:$0xff]
    %v422 = vld [vmem:[%s4 + $0xd0] sm:$0xff]
    %v423 = vld [vmem:[%s4 + $0xd8] sm:$0xff]
    %v424 = vld [vmem:[%s4 + $0xe0] sm:$0xff]
    %v425 = vld [vmem:[%s4 + $0xe8] sm:$0xff]
    %v426 = vld [vmem:[%s4 + $0xf0] sm:$0xff]
    %v427 = vld [vmem:[%s4 + $0xf8] sm:$0xff]
    %v428 = vld [vmem:[%s4 + $0x100] sm:$0xff]
    %v429 = vld [vmem:[%s4 + $0x108] sm:$0xff]
    %v430 = vld [vmem:[%s4 + $0x110] sm:$0xff]
    %v431 = vld [vmem:[%s4 + $0x118] sm:$0xff]
    %v432 = vld [vmem:[%s4 + $0x120] sm:$0xff]
    %v433 = vld [vmem:[%s4 + $0x128] sm:$0xff]
    %v434 = vld [vmem:[%s4 + $0x130] sm:$0xff]
    %v435 = vld [vmem:[%s4 + $0x138] sm:$0xff]
    %v436 = vld [vmem:[%s4 + $0x140] sm:$0xff]
    %v437 = vld [vmem:[%s4 + $0x148] sm:$0xff]
    %v438 = vld [vmem:[%s4 + $0x150] sm:$0xff]
    %v439 = vld [vmem:[%s4 + $0x158] sm:$0xff]
    %v440 = vld [vmem:[%s4 + $0x160] sm:$0xff]
    %v441 = vld [vmem:[%s4 + $0x168] sm:$0xff]
    %v442 = vld [vmem:[%s4 + $0x170] sm:$0xff]
    %v443 = vld [vmem:[%s4 + $0x178] sm:$0xff]
    %v444 = vld [vmem:[%s4 + $0x180] sm:$0xff]
    %v445 = vld [vmem:[%s4 + $0x188] sm:$0xff]
    %v446 = vld [vmem:[%s4 + $0x190] sm:$0xff]
    %v447 = vld [vmem:[%s4 + $0x198] sm:$0xff]
    %v448 = vld [vmem:[%s4 + $0x1a0] sm:$0xff]
    %v449 = vld [vmem:[%s4 + $0x1a8] sm:$0xff]
    %v450 = vld [vmem:[%s4 + $0x1b0] sm:$0xff]
    %v451 = vld [vmem:[%s4 + $0x1b8] sm:$0xff]
    %v452 = vld [vmem:[%s4 + $0x1c0] sm:$0xff]
    %v453 = vld [vmem:[%s4 + $0x1c8] sm:$0xff]
    %v454 = vld [vmem:[%s4 + $0x1d0] sm:$0xff]
    %v455 = vld [vmem:[%s4 + $0x1d8] sm:$0xff]
    %v456 = vld [vmem:[%s4 + $0x1e0] sm:$0xff]
    %v457 = vld [vmem:[%s4 + $0x1e8] sm:$0xff]
    %v458 = vld [vmem:[%s4 + $0x1f0] sm:$0xff]
    %v459 = vld [vmem:[%s4 + $0x1f8] sm:$0xff]
    %460 = vmatprep.subr.mxu0 %v397
    %461 = vmatpush1.msra.mxu0 %v396
    %462 = vmatprep.subr.mxu0 %v401
    %463 = vmatpush1.msra.mxu0 %v400
    %464 = vmatprep.subr.mxu0 %v405
    %465 = vmatpush1.msra.mxu0 %v404
    %466 = vmatprep.subr.mxu0 %v409
    %467 = vmatpush1.msra.mxu0 %v408
    %468 = vmatprep.subr.mxu0 %v413
    %469 = vmatpush1.msra.mxu0 %v412
    %470 = vmatprep.subr.mxu0 %v417
    %471 = vmatpush1.msra.mxu0 %v416
    %472 = vmatprep.subr.mxu0 %v421
    %473 = vmatpush1.msra.mxu0 %v420
    %474 = vmatprep.subr.mxu0 %v425
    %475 = vmatpush1.msra.mxu0 %v424
    %476 = vmatprep.subr.mxu0 %v429
    %477 = vmatpush1.msra.mxu0 %v428
    %478 = vmatprep.subr.mxu0 %v433
    %479 = vmatpush1.msra.mxu0 %v432
    %480 = vmatprep.subr.mxu0 %v437
    %481 = vmatpush1.msra.mxu0 %v436
    %482 = vmatprep.subr.mxu0 %v441
    %483 = vmatpush1.msra.mxu0 %v440
    %484 = vmatprep.subr.mxu0 %v445
    %485 = vmatpush1.msra.mxu0 %v444
    %486 = vmatprep.subr.mxu0 %v449
    %487 = vmatpush1.msra.mxu0 %v448
    %488 = vmatprep.subr.mxu0 %v453
    %489 = vmatpush1.msra.mxu0 %v452
    %490 = vmatprep.subr.mxu0 %v457
    %491 = vmatpush1.msra.mxu0 %v456
    %492 = vmatprep.subr.mxu0 0.0
    %493 = vmatpush1.msra.mxu0 0.0
    %494 = vmatprep.subr.mxu0 0.0
    %495 = vmatpush1.msra.mxu0 0.0
    %496 = vmatprep.subr.mxu0 0.0
    %497 = vmatpush1.msra.mxu0 0.0
    %498 = vmatprep.subr.mxu0 0.0
    %499 = vmatpush1.msra.mxu0 0.0
    %500 = vmatprep.subr.mxu0 0.0
    %501 = vmatpush1.msra.mxu0 0.0
    %502 = vmatprep.subr.mxu0 0.0
    %503 = vmatpush1.msra.mxu0 0.0
    %504 = vmatprep.subr.mxu0 0.0
    %505 = vmatpush1.msra.mxu0 0.0
    %506 = vmatprep.subr.mxu0 0.0
    %507 = vmatpush1.msra.mxu0 0.0
    %508 = vmatprep.subr.mxu0 0.0
    %509 = vmatpush1.msra.mxu0 0.0
    %510 = vmatprep.subr.mxu0 0.0
    %511 = vmatpush1.msra.mxu0 0.0
    %512 = vmatprep.subr.mxu0 0.0
    %513 = vmatpush1.msra.mxu0 0.0
    %514 = vmatprep.subr.mxu0 0.0
    %515 = vmatpush1.msra.mxu0 0.0
    %516 = vmatprep.subr.mxu0 0.0
    %517 = vmatpush1.msra.mxu0 0.0
    %518 = vmatprep.subr.mxu0 0.0
    %519 = vmatpush1.msra.mxu0 0.0
    %520 = vmatprep.subr.mxu0 0.0
    %521 = vmatpush1.msra.mxu0 0.0
    %522 = vmatprep.subr.mxu0 0.0
    %523 = vmatpush1.msra.mxu0 0.0
    %524 = vmatprep.mubr.f32.mxu0 0.0
    %525 = vmatmul.mubr.f32.gmra.mrb[0].mxu0 %v384
    %v526 = vpop.f32.mrb[0].mxu0
    %v527 = vadd.f32 0.0, %v526
    %v528 = vpop.f32.mrb[0].mxu0
    %v529 = vadd.f32 0.0, %v528
    %530 = vdwg.mxu0
    %531 = vmatprep.subr.mxu0 %v399
    %532 = vmatpush1.msra.mxu0 %v398
    %533 = vmatprep.subr.mxu0 %v403
    %534 = vmatpush1.msra.mxu0 %v402
    %535 = vmatprep.subr.mxu0 %v407
    %536 = vmatpush1.msra.mxu0 %v406
    %537 = vmatprep.subr.mxu0 %v411
    %538 = vmatpush1.msra.mxu0 %v410
    %539 = vmatprep.subr.mxu0 %v415
    %540 = vmatpush1.msra.mxu0 %v414
    %541 = vmatprep.subr.mxu0 %v419
    %542 = vmatpush1.msra.mxu0 %v418
    %543 = vmatprep.subr.mxu0 %v423
    %544 = vmatpush1.msra.mxu0 %v422
    %545 = vmatprep.subr.mxu0 %v427
    %546 = vmatpush1.msra.mxu0 %v426
    %547 = vmatprep.subr.mxu0 %v431
    %548 = vmatpush1.msra.mxu0 %v430
    %549 = vmatprep.subr.mxu0 %v435
    %550 = vmatpush1.msra.mxu0 %v434
    %551 = vmatprep.subr.mxu0 %v439
    %552 = vmatpush1.msra.mxu0 %v438
    %553 = vmatprep.subr.mxu0 %v443
    %554 = vmatpush1.msra.mxu0 %v442
    %555 = vmatprep.subr.mxu0 %v447
    %556 = vmatpush1.msra.mxu0 %v446
    %557 = vmatprep.subr.mxu0 %v451
    %558 = vmatpush1.msra.mxu0 %v450
    %559 = vmatprep.subr.mxu0 %v455
    %560 = vmatpush1.msra.mxu0 %v454
    %561 = vmatprep.subr.mxu0 %v459
    %562 = vmatpush1.msra.mxu0 %v458
    %563 = vmatprep.subr.mxu0 0.0
    %564 = vmatpush1.msra.mxu0 0.0
    %565 = vmatprep.subr.mxu0 0.0
    %566 = vmatpush1.msra.mxu0 0.0
    %567 = vmatprep.subr.mxu0 0.0
    %568 = vmatpush1.msra.mxu0 0.0
    %569 = vmatprep.subr.mxu0 0.0
    %570 = vmatpush1.msra.mxu0 0.0
    %571 = vmatprep.subr.mxu0 0.0
    %572 = vmatpush1.msra.mxu0 0.0
    %573 = vmatprep.subr.mxu0 0.0
    %574 = vmatpush1.msra.mxu0 0.0
    %575 = vmatprep.subr.mxu0 0.0
    %576 = vmatpush1.msra.mxu0 0.0
    %577 = vmatprep.subr.mxu0 0.0
    %578 = vmatpush1.msra.mxu0 0.0
    %579 = vmatprep.subr.mxu0 0.0
    %580 = vmatpush1.msra.mxu0 0.0
    %581 = vmatprep.subr.mxu0 0.0
    %582 = vmatpush1.msra.mxu0 0.0
    %583 = vmatprep.subr.mxu0 0.0
    %584 = vmatpush1.msra.mxu0 0.0
    %585 = vmatprep.subr.mxu0 0.0
    %586 = vmatpush1.msra.mxu0 0.0
    %587 = vmatprep.subr.mxu0 0.0
    %588 = vmatpush1.msra.mxu0 0.0
    %589 = vmatprep.subr.mxu0 0.0
    %590 = vmatpush1.msra.mxu0 0.0
    %591 = vmatprep.subr.mxu0 0.0
    %592 = vmatpush1.msra.mxu0 0.0
    %593 = vmatprep.subr.mxu0 0.0
    %594 = vmatpush1.msra.mxu0 0.0
    %595 = vmatprep.mubr.f32.mxu0 0.0
    %596 = vmatmul.mubr.f32.gmra.mrb[0].mxu0 %v384
    %v597 = vpop.f32.mrb[0].mxu0
    %v598 = vadd.f32 0.0, %v597
    %v599 = vpop.f32.mrb[0].mxu0
    %v600 = vadd.f32 0.0, %v599
    %601 = vdwg.mxu0
    %v602 = vadd.f32 %v392, %v527
    %v603 = vadd.f32 %v393, %v529
    %v604 = vadd.f32 %v394, %v598
    %v605 = vadd.f32 %v395, %v600
    %v606 = vxor.u32 %v602, 2147483648
    %v607 = vmul.f32 %v606, 1.442695
    %v608 = vpow.pop %v607
    %v609 = vadd.f32 %v608, 1.0
    %v610 = vrcp.pop %v609
    %v611 = vmul.f32 1.0, %v610
    %v612 = vxor.u32 %v603, 2147483648
    %v613 = vmul.f32 %v612, 1.442695
    %v614 = vpow.pop %v613
    %v615 = vadd.f32 %v614, 1.0
    %v616 = vrcp.pop %v615
    %v617 = vmul.f32 1.0, %v616
    %v618 = vtanh.pop %v604
    %v619 = vxor.u32 %v605, 2147483648
    %v620 = vmul.f32 %v619, 1.442695
    %v621 = vpow.pop %v620
    %v622 = vadd.f32 %v621, 1.0
    %v623 = vrcp.pop %v622
    %v624 = vmul.f32 1.0, %v623
    %v625 = vmul.f32 %v617, %v385
    %v626 = vmul.f32 %v611, %v618
    %v627 = vadd.f32 %v625, %v626
    %v628 = vtanh.pop %v627
    %v629 = vmul.f32 %v624, %v628
    %v630 = vstv %s379
    %vm631 = vcmp.lt.s32.totalorder %v630, %v376
    %v632 = vsel %vm631, %v629, %v384
    %v633 = vsel %vm631, %v627, %v385
  $region34: #{td_lstm_forward.1} parent=0 // loop_footer
    %s381 = sadd.s32 %s379, 1
  $region35: #{td_lstm_forward.1} parent=0 // loop_footer_branch
    %378 = sbr.rel target = $region31
  $region36: #{td_lstm_forward.1} parent=0 // loop_exit
    _
  %v634 = vld [vmem:[%s6] sm:$0xff]
  %v635 = vld [vmem:[%s6 + $0x8] sm:$0xff]
  %v636 = vld [vmem:[%s6 + $0x10] sm:$0xff]
  %v637 = vld [vmem:[%s6 + $0x18] sm:$0xff]
  %v638 = vld [vmem:[%s6 + $0x20] sm:$0xff]
  %v639 = vld [vmem:[%s6 + $0x28] sm:$0xff]
  %v640 = vld [vmem:[%s6 + $0x30] sm:$0xff]
  %v641 = vld [vmem:[%s6 + $0x38] sm:$0xff]
  %v642 = vld [vmem:[%s6 + $0x40] sm:$0xff]
  %v643 = vld [vmem:[%s6 + $0x48] sm:$0xff]
  %v644 = vld [vmem:[%s6 + $0x50] sm:$0xff]
  %v645 = vld [vmem:[%s6 + $0x58] sm:$0xff]
  %v646 = vld [vmem:[%s6 + $0x60] sm:$0xff]
  %v647 = vld [vmem:[%s6 + $0x68] sm:$0xff]
  %v648 = vld [vmem:[%s6 + $0x70] sm:$0xff]
  %v649 = vld [vmem:[%s6 + $0x78] sm:$0xff]
  %v650 = vld [vmem:[%s7] sm:$0x1]
  %v652 = vlaneseq
  %v653 = vshrl.u32 %v652, 7
  %v654 = vsub.s32 0, %v653
  %v655 = vrot.slane %v650, %v654
  %657 = vmatprep.subr.mxu0 0.0
  %658 = vmatpush1.msra.mxu0 %v634
  %659 = vmatprep.subr.mxu0 0.0
  %660 = vmatpush1.msra.mxu0 %v635
  %661 = vmatprep.subr.mxu0 0.0
  %662 = vmatpush1.msra.mxu0 %v636
  %663 = vmatprep.subr.mxu0 0.0
  %664 = vmatpush1.msra.mxu0 %v637
  %665 = vmatprep.subr.mxu0 0.0
  %666 = vmatpush1.msra.mxu0 %v638
  %667 = vmatprep.subr.mxu0 0.0
  %668 = vmatpush1.msra.mxu0 %v639
  %669 = vmatprep.subr.mxu0 0.0
  %670 = vmatpush1.msra.mxu0 %v640
  %671 = vmatprep.subr.mxu0 0.0
  %672 = vmatpush1.msra.mxu0 %v641
  %673 = vmatprep.subr.mxu0 0.0
  %674 = vmatpush1.msra.mxu0 %v642
  %675 = vmatprep.subr.mxu0 0.0
  %676 = vmatpush1.msra.mxu0 %v643
  %677 = vmatprep.subr.mxu0 0.0
  %678 = vmatpush1.msra.mxu0 %v644
  %679 = vmatprep.subr.mxu0 0.0
  %680 = vmatpush1.msra.mxu0 %v645
  %681 = vmatprep.subr.mxu0 0.0
  %682 = vmatpush1.msra.mxu0 %v646
  %683 = vmatprep.subr.mxu0 0.0
  %684 = vmatpush1.msra.mxu0 %v647
  %685 = vmatprep.subr.mxu0 0.0
  %686 = vmatpush1.msra.mxu0 %v648
  %687 = vmatprep.subr.mxu0 0.0
  %688 = vmatpush1.msra.mxu0 %v649
  %689 = vmatprep.subr.mxu0 0.0
  %690 = vmatpush1.msra.mxu0 0.0
  %691 = vmatprep.subr.mxu0 0.0
  %692 = vmatpush1.msra.mxu0 0.0
  %693 = vmatprep.subr.mxu0 0.0
  %694 = vmatpush1.msra.mxu0 0.0
  %695 = vmatprep.subr.mxu0 0.0
  %696 = vmatpush1.msra.mxu0 0.0
  %697 = vmatprep.subr.mxu0 0.0
  %698 = vmatpush1.msra.mxu0 0.0
  %699 = vmatprep.subr.mxu0 0.0
  %700 = vmatpush1.msra.mxu0 0.0
  %701 = vmatprep.subr.mxu0 0.0
  %702 = vmatpush1.msra.mxu0 0.0
  %703 = vmatprep.subr.mxu0 0.0
  %704 = vmatpush1.msra.mxu0 0.0
  %705 = vmatprep.subr.mxu0 0.0
  %706 = vmatpush1.msra.mxu0 0.0
  %707 = vmatprep.subr.mxu0 0.0
  %708 = vmatpush1.msra.mxu0 0.0
  %709 = vmatprep.subr.mxu0 0.0
  %710 = vmatpush1.msra.mxu0 0.0
  %711 = vmatprep.subr.mxu0 0.0
  %712 = vmatpush1.msra.mxu0 0.0
  %713 = vmatprep.subr.mxu0 0.0
  %714 = vmatpush1.msra.mxu0 0.0
  %715 = vmatprep.subr.mxu0 0.0
  %716 = vmatpush1.msra.mxu0 0.0
  %717 = vmatprep.subr.mxu0 0.0
  %718 = vmatpush1.msra.mxu0 0.0
  %719 = vmatprep.subr.mxu0 0.0
  %720 = vmatpush1.msra.mxu0 0.0
  %721 = vmatprep.mubr.f32.mxu0 0.0
  %722 = vmatmul.mubr.f32.gmra.mrb[0].mxu0 %v384
  %v723 = vpop.f32.mrb[0].mxu0
  %v724 = vadd.f32 %v655, %v723
  %v725 = vpop.f32.mrb[0].mxu0
  %726 = vdwg.mxu0
  %727 = vst [vmem:[%s8] sm:$0xff] %v724
  // Predicated region
  $region37: #{td_lstm_forward.1} parent=0 // pred_check
    _
  $region38: #{td_lstm_forward.1} parent=0 // pred_check_branch
    %729 = sbr.rel (0) target = $region40
  $region39: #{td_lstm_forward.1} parent=0 // pred_region
    _
  $region40: #{td_lstm_forward.1} parent=0 // pred_fallthru
    _
  // Predicated region
  $region41: #{td_lstm_forward.1} parent=0 // pred_check
    _
  $region42: #{td_lstm_forward.1} parent=0 // pred_check_branch
    %731 = sbr.rel (0) target = $region44
  $region43: #{td_lstm_forward.1} parent=0 // pred_region
    _
  $region44: #{td_lstm_forward.1} parent=0 // pred_fallthru
    _

</llo_original>
